<compile_context>
chip_gen: v5e
topology: v5e:2x2
jax: 0.10.0
libtpu: 0.0.40
codegen_flags: <defaults>
</compile_context>

<pallas_src>
import jax
import jax.numpy as jnp
from jax.experimental import pallas as pl
from jax.experimental.pallas import tpu as pltpu


def _round_up(n, m):
    return ((n + m - 1) // m) * m


def _mlp_kernel(x_ref, w1_ref, b1_ref, w2_ref, b2_ref, o_ref):
    # Two MXU matmuls + bias-add + ReLU, fully fused in VMEM.
    # Accumulate in f32 regardless of operand dtype (f32 or bf16).
    h = jnp.dot(x_ref[...], w1_ref[...], preferred_element_type=jnp.float32)
    h = jnp.maximum(h + b1_ref[...], 0.0)
    o = jnp.dot(h.astype(w2_ref.dtype), w2_ref[...],
                preferred_element_type=jnp.float32)
    o_ref[...] = jnp.maximum(o + b2_ref[...], 0.0).astype(o_ref.dtype)


def mlp_forward(x, w1, b1, w2, b2, *, batch_tile=256, compute_dtype=None):
    """Fused MLP forward.

    x: [B, inp]; w1: [inp, hidd]; b1: [hidd]; w2: [hidd, out]; b2: [out].
    batch_tile: rows per grid step (multiple of 8; 128-multiples map best to MXU).
    compute_dtype: optional matmul operand dtype (e.g. jnp.bfloat16); accumulation
                   is always f32 and the result is returned in x.dtype.
    """
    B, inp = x.shape
    hidd = w1.shape[1]
    out = w2.shape[1]
    assert batch_tile % 8 == 0, "batch_tile must be a multiple of 8 sublanes"

    # --- Pad to hardware-friendly shapes (lane-dense features, tiled batch). ---
    inp_p = _round_up(inp, 128)
    hid_p = _round_up(hidd, 128)
    out_p = _round_up(out, 128)
    B_p = _round_up(B, batch_tile)

    x_p = jnp.pad(x, ((0, B_p - B), (0, inp_p - inp)))
    w1_p = jnp.pad(w1, ((0, inp_p - inp), (0, hid_p - hidd)))
    b1_p = jnp.pad(b1, ((0, hid_p - hidd),)).reshape(1, hid_p).astype(jnp.float32)
    w2_p = jnp.pad(w2, ((0, hid_p - hidd), (0, out_p - out)))
    b2_p = jnp.pad(b2, ((0, out_p - out),)).reshape(1, out_p).astype(jnp.float32)

    if compute_dtype is not None:
        x_p = x_p.astype(compute_dtype)
        w1_p = w1_p.astype(compute_dtype)
        w2_p = w2_p.astype(compute_dtype)

    grid = (B_p // batch_tile,)
    y_p = pl.pallas_call(
        _mlp_kernel,
        out_shape=jax.ShapeDtypeStruct((B_p, out_p), x.dtype),
        grid_spec=pltpu.PrefetchScalarGridSpec(
            num_scalar_prefetch=0,
            grid=grid,
            in_specs=[
                pl.BlockSpec((batch_tile, inp_p), lambda i: (i, 0)),  # x tile (streamed)
                pl.BlockSpec((inp_p, hid_p), lambda i: (0, 0)),       # w1 (resident)
                pl.BlockSpec((1, hid_p), lambda i: (0, 0)),           # b1
                pl.BlockSpec((hid_p, out_p), lambda i: (0, 0)),       # w2 (resident)
                pl.BlockSpec((1, out_p), lambda i: (0, 0)),           # b2
            ],
            out_specs=pl.BlockSpec((batch_tile, out_p), lambda i: (i, 0)),
        ),
        compiler_params=pltpu.CompilerParams(
            dimension_semantics=("parallel",),  # batch axis shards across TCs (v7x)
        ),
    )(x_p, w1_p, b1_p, w2_p, b2_p)

    # Slice away batch / feature padding.
    return y_p[:B, :out]


def reference_forward(x, w1, b1, w2, b2):
    h = jnp.maximum(x @ w1 + b1, 0.0)
    return jnp.maximum(h @ w2 + b2, 0.0)


if __name__ == "__main__":
    # Small shapes consistent with the module (inp=32, hidd=64, out=16).
    # Batch chosen ragged (1000 -> padded to 1024, 4 grid steps of 256 rows)
    # to exercise tail padding and keep >=2 grid steps for v7x megacore.
    key = jax.random.PRNGKey(0)
    k_x, k_w1, k_b1, k_w2, k_b2 = jax.random.split(key, 5)

    B, inp, hidd, out = 1000, 32, 64, 16

    x = jax.random.normal(k_x, (B, inp), dtype=jnp.float32)

    # Deterministic "PyTorch-like" uniform init: U(-1/sqrt(fan_in), 1/sqrt(fan_in))
    lim1 = 1.0 / (inp ** 0.5)
    lim2 = 1.0 / (hidd ** 0.5)
    w1 = jax.random.uniform(k_w1, (inp, hidd), jnp.float32, -lim1, lim1)
    b1 = jax.random.uniform(k_b1, (hidd,), jnp.float32, -lim1, lim1)
    w2 = jax.random.uniform(k_w2, (hidd, out), jnp.float32, -lim2, lim2)
    b2 = jax.random.uniform(k_b2, (out,), jnp.float32, -lim2, lim2)

    y_ref = reference_forward(x, w1, b1, w2, b2)

    # f32 path: exact-semantics check against the JAX reference.
    y = mlp_forward(x, w1, b1, w2, b2, batch_tile=256)
    jax.block_until_ready(y)
    assert y.shape == (B, out)
    assert jnp.allclose(y, y_ref, atol=1e-5, rtol=1e-5), "f32 mismatch vs reference"

    # bf16 operand path (MXU-native on v6e/v7x), f32 accumulation; looser tolerance.
    y_bf16 = mlp_forward(x, w1, b1, w2, b2, batch_tile=256,
                         compute_dtype=jnp.bfloat16)
    jax.block_until_ready(y_bf16)
    assert y_bf16.shape == (B, out)
    assert jnp.allclose(y_bf16, y_ref, atol=5e-2, rtol=5e-2), "bf16 mismatch vs reference"

    print("KERNEL_OK")
</pallas_src>

<mosaic_0001>
module attributes {stable_mosaic.version = 11 : i64} {
  func.func @_mlp_kernel(%arg0: i32, %arg1: memref<256x128xf32, #tpu.memory_space<vmem>>, %arg2: memref<128x128xf32, #tpu.memory_space<vmem>>, %arg3: memref<1x128xf32, #tpu.memory_space<vmem>>, %arg4: memref<128x128xf32, #tpu.memory_space<vmem>>, %arg5: memref<1x128xf32, #tpu.memory_space<vmem>>, %arg6: memref<256x128xf32, #tpu.memory_space<vmem>>) attributes {dimension_semantics = [#tpu.dimension_semantics<parallel>], iteration_bounds = array<i64: 4>, scalar_prefetch = 0 : i64, scratch_operands = 0 : i64, tpu.core_type = #tpu.core_type<tc>, window_params = [{transform_indices = @transform_0, window_bounds = array<i64: 256, 128>}, {pipeline_mode = #tpu.pipeline_mode<synchronous>, transform_indices = @transform_1, window_bounds = array<i64: 128, 128>}, {pipeline_mode = #tpu.pipeline_mode<synchronous>, transform_indices = @transform_2, window_bounds = array<i64: 1, 128>}, {pipeline_mode = #tpu.pipeline_mode<synchronous>, transform_indices = @transform_3, window_bounds = array<i64: 128, 128>}, {pipeline_mode = #tpu.pipeline_mode<synchronous>, transform_indices = @transform_4, window_bounds = array<i64: 1, 128>}, {transform_indices = @transform_5, window_bounds = array<i64: 256, 128>}]} {
    %c0 = arith.constant 0 : index
    %c0_0 = arith.constant 0 : index
    %0 = vector.load %arg1[%c0, %c0_0] : memref<256x128xf32, #tpu.memory_space<vmem>>, vector<256x128xf32>
    %c0_1 = arith.constant 0 : index
    %c0_2 = arith.constant 0 : index
    %1 = vector.load %arg2[%c0_1, %c0_2] : memref<128x128xf32, #tpu.memory_space<vmem>>, vector<128x128xf32>
    %cst = arith.constant dense<0.000000e+00> : vector<256x128xf32>
    %2 = tpu.matmul %0, %1, %cst {dimension_numbers = #tpu.dot_dimension_numbers<[1], [0], [0], [1], [0, 0, 1, 1], [], []>} : vector<256x128xf32>, vector<128x128xf32>, vector<256x128xf32> -> vector<256x128xf32>
    %c0_3 = arith.constant 0 : index
    %c0_4 = arith.constant 0 : index
    %3 = vector.load %arg3[%c0_3, %c0_4] : memref<1x128xf32, #tpu.memory_space<vmem>>, vector<1x128xf32>
    %4 = vector.broadcast %3 : vector<1x128xf32> to vector<256x128xf32>
    %5 = arith.addf %2, %4 : vector<256x128xf32>
    %cst_5 = arith.constant 0.000000e+00 : f32
    %6 = vector.broadcast %cst_5 : f32 to vector<256x128xf32>
    %7 = arith.maximumf %5, %6 : vector<256x128xf32>
    %c0_6 = arith.constant 0 : index
    %c0_7 = arith.constant 0 : index
    %8 = vector.load %arg4[%c0_6, %c0_7] : memref<128x128xf32, #tpu.memory_space<vmem>>, vector<128x128xf32>
    %cst_8 = arith.constant dense<0.000000e+00> : vector<256x128xf32>
    %9 = tpu.matmul %7, %8, %cst_8 {dimension_numbers = #tpu.dot_dimension_numbers<[1], [0], [0], [1], [0, 0, 1, 1], [], []>} : vector<256x128xf32>, vector<128x128xf32>, vector<256x128xf32> -> vector<256x128xf32>
    %c0_9 = arith.constant 0 : index
    %c0_10 = arith.constant 0 : index
    %10 = vector.load %arg5[%c0_9, %c0_10] : memref<1x128xf32, #tpu.memory_space<vmem>>, vector<1x128xf32>
    %11 = vector.broadcast %10 : vector<1x128xf32> to vector<256x128xf32>
    %12 = arith.addf %9, %11 : vector<256x128xf32>
    %cst_11 = arith.constant 0.000000e+00 : f32
    %13 = vector.broadcast %cst_11 : f32 to vector<256x128xf32>
    %14 = arith.maximumf %12, %13 : vector<256x128xf32>
    %c0_12 = arith.constant 0 : index
    %c0_13 = arith.constant 0 : index
    %15 = vector.load %arg6[%c0_12, %c0_13] : memref<256x128xf32, #tpu.memory_space<vmem>>, vector<256x128xf32>
    tpu.vector_store %arg6[%c0_12, %c0_13], %14 {strides = array<i32>} : memref<256x128xf32, #tpu.memory_space<vmem>>, vector<256x128xf32>,
    return
  }
  func.func @transform_0(%arg0: i32) -> (i32, i32) {
    %c0_i32 = arith.constant 0 : i32
    %c0_i32_0 = arith.constant 0 : i32
    return %arg0, %c0_i32 : i32, i32
  }
  func.func @transform_1(%arg0: i32) -> (i32, i32) {
    %c0_i32 = arith.constant 0 : i32
    %c0_i32_0 = arith.constant 0 : i32
    %c0_i32_1 = arith.constant 0 : i32
    return %c0_i32, %c0_i32_0 : i32, i32
  }
  func.func @transform_2(%arg0: i32) -> (i32, i32) {
    %c0_i32 = arith.constant 0 : i32
    %c0_i32_0 = arith.constant 0 : i32
    %c0_i32_1 = arith.constant 0 : i32
    return %c0_i32, %c0_i32_0 : i32, i32
  }
  func.func @transform_3(%arg0: i32) -> (i32, i32) {
    %c0_i32 = arith.constant 0 : i32
    %c0_i32_0 = arith.constant 0 : i32
    %c0_i32_1 = arith.constant 0 : i32
    return %c0_i32, %c0_i32_0 : i32, i32
  }
  func.func @transform_4(%arg0: i32) -> (i32, i32) {
    %c0_i32 = arith.constant 0 : i32
    %c0_i32_0 = arith.constant 0 : i32
    %c0_i32_1 = arith.constant 0 : i32
    return %c0_i32, %c0_i32_0 : i32, i32
  }
  func.func @transform_5(%arg0: i32) -> (i32, i32) {
    %c0_i32 = arith.constant 0 : i32
    %c0_i32_0 = arith.constant 0 : i32
    return %arg0, %c0_i32 : i32, i32
  }
}

</mosaic_0001>

<llo_original>
// kernel: tpu_custom_call.1
$region0: #{tpu_custom_call.1}
  #allocation0 [shape = 'u32[]', space=smem, size = 0x4, offset = 0x4, fixed_abs, tag = 'smem constant byte address 0x4 - core index']
  #allocation1 [shape = 'u32[72,128]{1,0:T(1,128)}', space=vmem, size = 0x9000, scoped, tag = 'internal scratch']
  %s0 = inlined_call_operand.hbm [shape: f32[1024,128], index: 0, kind: input, shape index: {}]
  %s1 = inlined_call_operand.hbm [shape: f32[128,128], index: 1, kind: input, shape index: {}]
  %s2 = inlined_call_operand.vmem [shape: f32[1,128], index: 2, kind: input, shape index: {}]
  %s3 = inlined_call_operand.hbm [shape: f32[128,128], index: 3, kind: input, shape index: {}]
  %s4 = inlined_call_operand.vmem [shape: f32[1,128], index: 4, kind: input, shape index: {}]
  %s5 = inlined_call_operand.hbm [shape: f32[1024,128], index: 5, kind: output, shape index: {}]
  %s6 = sld [smem:[#allocation0]]
  $region65: #{tpu_custom_call.1} parent=0
    _
  %s8 = ssub.s32 1, %s6
  %s9 = scalar_select 0, %s8, %s6
  $region1: #{tpu_custom_call.1} parent=0
    #allocation2 [shape = 'u8[262144]{0}', space=vmem, size = 0x40000, scoped, tag = 'input window, operand 0']
    #allocation3 [shape = 's32[2]{0}', space=sflag, size = 0x8, scoped, tag = 'scoped memory for tpu_custom_call.1']
    #allocation4 [shape = 's32[2]{0}', space=sflag, size = 0x8, scoped, tag = 'scoped memory for tpu_custom_call.1']
    #allocation5 [shape = 'u8[65536]{0}', space=vmem, size = 0x10000, scoped, tag = 'input window, operand 1, single buffered']
    #allocation6 [shape = 's32[1]{0}', space=sflag, size = 0x4, scoped, tag = 'scoped memory for tpu_custom_call.1']
    #allocation7 [shape = 'u8[65536]{0}', space=vmem, size = 0x10000, scoped, tag = 'input window, operand 3, single buffered']
    #allocation8 [shape = 'u8[262144]{0}', space=vmem, size = 0x40000, scoped, tag = 'output window, operand 0']
    %10 = vsyncpa [#allocation3], 0
    %s11 = scalar_lea.sflag [#allocation3], 1
    %12 = vsyncpa %s11, 0
    %13 = vsyncpa [#allocation6], 0
    %14 = vsyncpa [#allocation4], 0
    %s15 = scalar_lea.sflag [#allocation4], 1
    %16 = vsyncpa %s15, 0
    loop: start=0, step=1, limit=6
    $region2: #{tpu_custom_call.1} parent=1 // loop_pre_header
      _
    $region3: #{tpu_custom_call.1} parent=1 // loop_header
      %s18 = sphi 0, %s22
      %p19 = scmp.ge.s32.totalorder %s18, 6
      %s28 = sphi 0, %s30
      %s31 = sphi 0, %s28
      %s32 = sphi 0, %s31
      %s48 = sphi 0, %s32
      %s52 = sphi 0, %s52
      %s54 = sphi 0, %s52
      %s55 = sphi 0, %s54
      %s69 = sphi 0, %s55
      %s73 = sphi 0, %s73
      %s75 = sphi 0, %s73
      %s76 = sphi 0, %s75
      %s90 = sphi 0, %s76
      %s94 = sphi 0, %s94
      %s96 = sphi 0, %s94
      %s97 = sphi 0, %s96
      %s111 = sphi 0, %s97
      %s115 = sphi 0, %s115
      %s117 = sphi 0, %s115
      %s118 = sphi 0, %s117
      %s132 = sphi 0, %s118
      %s138 = sphi 0, %s140
      %s141 = sphi 0, %s138
      %s142 = sphi 0, %s141
      %s158 = sphi 0, %s142
    $region4: #{tpu_custom_call.1} parent=1 // loop_header_branch
      %21 = sbr.rel (%p19) target = $region8
    $region5: #{tpu_custom_call.1} parent=1 // loop_body
      %s23 = ssub.s32 %s18, 1
      %s24 = ssub.s32 %s18, 2
      %s25 = sadd.s32 %s18, 1
      %s26 = ssub.s32 %s18, %s25
      %p27 = scmp.eq.s32.totalorder %s26, 0
      %s29 = sadd.s32 %s28, 1
      %s30 = scalar_select %p27, %s28, %s29
      %p33 = pneg %p27
      %p34 = scmp.eq.s32.totalorder %s18, 3
      %p35 = por %p33, %p34
      %p36 = scmp.ne.s32.totalorder %s28, %s31
      %p37 = scmp.eq.s32.totalorder %s18, 0
      %p38 = por %p36, %p37
      %p39 = scmp.ne.s32.totalorder %s28, %s31
      %p40 = scmp.eq.s32.totalorder %s23, 3
      %p41 = por %p39, %p40
      %p42 = scmp.ne.s32.totalorder %s31, %s32
      %p43 = scmp.eq.s32.totalorder %s23, 0
      %p44 = por %p42, %p43
      %p45 = scmp.ne.s32.totalorder %s31, %s32
      %p46 = scmp.eq.s32.totalorder %s24, 3
      %p47 = por %p45, %p46
      %p49 = scmp.ne.s32.totalorder %s32, %s48
      %p50 = scmp.eq.s32.totalorder %s24, 0
      %p51 = por %p49, %p50
      %s53 = sadd.s32 %s52, 1
      %p56 = scmp.eq.s32.totalorder %s18, 3
      %p57 = scmp.ne.s32.totalorder %s52, %s54
      %p58 = scmp.eq.s32.totalorder %s18, 0
      %p59 = por %p57, %p58
      %p60 = scmp.ne.s32.totalorder %s52, %s54
      %p61 = scmp.eq.s32.totalorder %s23, 3
      %p62 = por %p60, %p61
      %p63 = scmp.ne.s32.totalorder %s54, %s55
      %p64 = scmp.eq.s32.totalorder %s23, 0
      %p65 = por %p63, %p64
      %p66 = scmp.ne.s32.totalorder %s54, %s55
      %p67 = scmp.eq.s32.totalorder %s24, 3
      %p68 = por %p66, %p67
      %p70 = scmp.ne.s32.totalorder %s55, %s69
      %p71 = scmp.eq.s32.totalorder %s24, 0
      %p72 = por %p70, %p71
      %s74 = sadd.s32 %s73, 1
      %p77 = scmp.eq.s32.totalorder %s18, 3
      %p78 = scmp.ne.s32.totalorder %s73, %s75
      %p79 = scmp.eq.s32.totalorder %s18, 0
      %p80 = por %p78, %p79
      %p81 = scmp.ne.s32.totalorder %s73, %s75
      %p82 = scmp.eq.s32.totalorder %s23, 3
      %p83 = por %p81, %p82
      %p84 = scmp.ne.s32.totalorder %s75, %s76
      %p85 = scmp.eq.s32.totalorder %s23, 0
      %p86 = por %p84, %p85
      %p87 = scmp.ne.s32.totalorder %s75, %s76
      %p88 = scmp.eq.s32.totalorder %s24, 3
      %p89 = por %p87, %p88
      %p91 = scmp.ne.s32.totalorder %s76, %s90
      %p92 = scmp.eq.s32.totalorder %s24, 0
      %p93 = por %p91, %p92
      %s95 = sadd.s32 %s94, 1
      %p98 = scmp.eq.s32.totalorder %s18, 3
      %p99 = scmp.ne.s32.totalorder %s94, %s96
      %p100 = scmp.eq.s32.totalorder %s18, 0
      %p101 = por %p99, %p100
      %p102 = scmp.ne.s32.totalorder %s94, %s96
      %p103 = scmp.eq.s32.totalorder %s23, 3
      %p104 = por %p102, %p103
      %p105 = scmp.ne.s32.totalorder %s96, %s97
      %p106 = scmp.eq.s32.totalorder %s23, 0
      %p107 = por %p105, %p106
      %p108 = scmp.ne.s32.totalorder %s96, %s97
      %p109 = scmp.eq.s32.totalorder %s24, 3
      %p110 = por %p108, %p109
      %p112 = scmp.ne.s32.totalorder %s97, %s111
      %p113 = scmp.eq.s32.totalorder %s24, 0
      %p114 = por %p112, %p113
      %s116 = sadd.s32 %s115, 1
      %p119 = scmp.eq.s32.totalorder %s18, 3
      %p120 = scmp.ne.s32.totalorder %s115, %s117
      %p121 = scmp.eq.s32.totalorder %s18, 0
      %p122 = por %p120, %p121
      %p123 = scmp.ne.s32.totalorder %s115, %s117
      %p124 = scmp.eq.s32.totalorder %s23, 3
      %p125 = por %p123, %p124
      %p126 = scmp.ne.s32.totalorder %s117, %s118
      %p127 = scmp.eq.s32.totalorder %s23, 0
      %p128 = por %p126, %p127
      %p129 = scmp.ne.s32.totalorder %s117, %s118
      %p130 = scmp.eq.s32.totalorder %s24, 3
      %p131 = por %p129, %p130
      %p133 = scmp.ne.s32.totalorder %s118, %s132
      %p134 = scmp.eq.s32.totalorder %s24, 0
      %p135 = por %p133, %p134
      %s136 = ssub.s32 %s18, %s25
      %p137 = scmp.eq.s32.totalorder %s136, 0
      %s139 = sadd.s32 %s138, 1
      %s140 = scalar_select %p137, %s138, %s139
      %p143 = pneg %p137
      %p144 = scmp.eq.s32.totalorder %s18, 3
      %p145 = por %p143, %p144
      %p146 = scmp.ne.s32.totalorder %s138, %s141
      %p147 = scmp.eq.s32.totalorder %s18, 0
      %p148 = por %p146, %p147
      %p149 = scmp.ne.s32.totalorder %s138, %s141
      %p150 = scmp.eq.s32.totalorder %s23, 3
      %p151 = por %p149, %p150
      %p152 = scmp.ne.s32.totalorder %s141, %s142
      %p153 = scmp.eq.s32.totalorder %s23, 0
      %p154 = por %p152, %p153
      %p155 = scmp.ne.s32.totalorder %s141, %s142
      %p156 = scmp.eq.s32.totalorder %s24, 3
      %p157 = por %p155, %p156
      %p159 = scmp.ne.s32.totalorder %s142, %s158
      %p160 = scmp.eq.s32.totalorder %s24, 0
      %p161 = por %p159, %p160
      %p162 = scmp.le.s32.totalorder 1, %s18
      %p163 = scmp.lt.s32.totalorder %s18, 5
      %p164 = pnand %p162, %p163
      %p165 = pneg %p164
      // Predicated region
      $region9: #{tpu_custom_call.1} parent=5 // pred_check
        _
      $region10: #{tpu_custom_call.1} parent=5 // pred_check_branch
        %167 = sbr.rel (%p164) target = $region12
      $region11: #{tpu_custom_call.1} parent=5 // pred_region
        %s168 = ssub.s32 %s18, 1
        // Predicated region
        $region13: #{tpu_custom_call.1} parent=11 // pred_check
          %p169 = pneg %p65
        $region14: #{tpu_custom_call.1} parent=11 // pred_check_branch
          %171 = sbr.rel (%p169) target = $region16
        $region15: #{tpu_custom_call.1} parent=11 // pred_region
          %173 = vsyncadd [#allocation6], 0
          %s174 = sshll.u32 %s1, 4
          %s175 = int_to_ptr.hbm [resolvable:$true] %s174
          %s176 = sshll.u32 [#allocation5], 4
          %s177 = int_to_ptr.vmem [resolvable:$true] %s176
          %182 = dma.hbm_to_vmem [thread:$0]  %s175, 2048, %s177, [#allocation6], 128, 128, 8
        $region16: #{tpu_custom_call.1} parent=11 // pred_fallthru
          _
        // Predicated region
        $region17: #{tpu_custom_call.1} parent=11 // pred_check
          %p183 = pneg %p86
        $region18: #{tpu_custom_call.1} parent=11 // pred_check_branch
          %185 = sbr.rel (%p183) target = $region20
        $region19: #{tpu_custom_call.1} parent=11 // pred_region
          _
        $region20: #{tpu_custom_call.1} parent=11 // pred_fallthru
          _
        // Predicated region
        $region21: #{tpu_custom_call.1} parent=11 // pred_check
          %p186 = pneg %p107
        $region22: #{tpu_custom_call.1} parent=11 // pred_check_branch
          %188 = sbr.rel (%p186) target = $region24
        $region23: #{tpu_custom_call.1} parent=11 // pred_region
          %190 = vsyncadd [#allocation6], 0
          %s191 = sshll.u32 %s3, 4
          %s192 = int_to_ptr.hbm [resolvable:$true] %s191
          %s193 = sshll.u32 [#allocation7], 4
          %s194 = int_to_ptr.vmem [resolvable:$true] %s193
          %199 = dma.hbm_to_vmem [thread:$0]  %s192, 2048, %s194, [#allocation6], 128, 128, 8
        $region24: #{tpu_custom_call.1} parent=11 // pred_fallthru
          _
        // Predicated region
        $region25: #{tpu_custom_call.1} parent=11 // pred_check
          %p200 = pneg %p128
        $region26: #{tpu_custom_call.1} parent=11 // pred_check_branch
          %202 = sbr.rel (%p200) target = $region28
        $region27: #{tpu_custom_call.1} parent=11 // pred_region
          _
        $region28: #{tpu_custom_call.1} parent=11 // pred_fallthru
          _
      $region12: #{tpu_custom_call.1} parent=5 // pred_fallthru
        _
      %p203 = scmp.lt.s32.totalorder %s18, 4
      // Predicated region
      $region29: #{tpu_custom_call.1} parent=5 // pred_check
        %p204 = pneg %p203
      $region30: #{tpu_custom_call.1} parent=5 // pred_check_branch
        %206 = sbr.rel (%p204) target = $region32
      $region31: #{tpu_custom_call.1} parent=5 // pred_region
        // Predicated region
        $region33: #{tpu_custom_call.1} parent=31 // pred_check
          %p207 = pneg %p38
        $region34: #{tpu_custom_call.1} parent=31 // pred_check_branch
          %209 = sbr.rel (%p207) target = $region36
        $region35: #{tpu_custom_call.1} parent=31 // pred_region
          %s210 = sand.u32 %s28, 1
          %s211 = scalar_lea.sflag [#allocation3], %s210
          %s212 = sand.u32 %s28, 1
          %s213 = smul.addr %s212, 256
          %s214 = scalar_lea.vmem [#allocation2], %s213
          %s215 = smul.u32 32, %s18
          %217 = vsyncadd %s211, 0
          %s218 = smul.addr %s215, 8
          %s219 = scalar_lea.hbm %s0, %s218
          %s220 = sshll.u32 %s219, 4
          %s221 = int_to_ptr.hbm [resolvable:$true] %s220
          %s222 = sshll.u32 %s214, 4
          %s223 = int_to_ptr.vmem [resolvable:$true] %s222
          %228 = dma.hbm_to_vmem [thread:$0]  %s221, 4096, %s223, %s211, 128, 128, 8
        $region36: #{tpu_custom_call.1} parent=31 // pred_fallthru
          _
      $region32: #{tpu_custom_call.1} parent=5 // pred_fallthru
        _
      %p229 = scmp.le.s32.totalorder 1, %s18
      %p230 = scmp.lt.s32.totalorder %s18, 5
      %p231 = pnand %p229, %p230
      %p232 = pneg %p231
      // Predicated region
      $region37: #{tpu_custom_call.1} parent=5 // pred_check
        _
      $region38: #{tpu_custom_call.1} parent=5 // pred_check_branch
        %234 = sbr.rel (%p231) target = $region40
      $region39: #{tpu_custom_call.1} parent=5 // pred_region
        %s235 = ssub.s32 %s18, 1
        %s236 = sand.u32 %s31, 1
        %s237 = scalar_lea.sflag [#allocation3], %s236
        %s238 = sand.u32 %s31, 1
        %s239 = smul.addr %s238, 256
        %s240 = scalar_lea.vmem [#allocation2], %s239
        // Predicated region
        $region41: #{tpu_custom_call.1} parent=39 // pred_check
          %p241 = pneg %p44
        $region42: #{tpu_custom_call.1} parent=39 // pred_check_branch
          %243 = sbr.rel (%p241) target = $region44
        $region43: #{tpu_custom_call.1} parent=39 // pred_region
          %245 = dma.done %s237, 4096
        $region44: #{tpu_custom_call.1} parent=39 // pred_fallthru
          _
        // Predicated region
        $region45: #{tpu_custom_call.1} parent=39 // pred_check
          %p246 = pneg %p65
        $region46: #{tpu_custom_call.1} parent=39 // pred_check_branch
          %248 = sbr.rel (%p246) target = $region48
        $region47: #{tpu_custom_call.1} parent=39 // pred_region
          %250 = dma.done [#allocation6], 2048
        $region48: #{tpu_custom_call.1} parent=39 // pred_fallthru
          _
        // Predicated region
        $region49: #{tpu_custom_call.1} parent=39 // pred_check
          %p251 = pneg %p107
        $region50: #{tpu_custom_call.1} parent=39 // pred_check_branch
          %253 = sbr.rel (%p251) target = $region52
        $region51: #{tpu_custom_call.1} parent=39 // pred_region
          %255 = dma.done [#allocation6], 2048
        $region52: #{tpu_custom_call.1} parent=39 // pred_fallthru
          _
        %s256 = sand.u32 %s31, 1
        %s257 = scalar_lea.sflag [#allocation3], %s256
        %s258 = sand.u32 %s31, 1
        %s259 = smul.addr %s258, 256
        %s260 = scalar_lea.vmem [#allocation2], %s259
        %p261 = pneg %p44
        %p262 = pneg %p41
        %p263 = pneg %p65
        %p264 = pneg %p62
        %p265 = pneg %p86
        %p266 = pneg %p83
        %p267 = pneg %p107
        %p268 = pneg %p104
        %p269 = pneg %p128
        %p270 = pneg %p125
        %p271 = pneg %p154
        %p272 = pneg %p151
        %s273 = sand.u32 %s141, 1
        %s274 = scalar_lea.sflag [#allocation4], %s273
        %s275 = sand.u32 %s141, 1
        %s276 = smul.addr %s275, 256
        %s277 = scalar_lea.vmem [#allocation8], %s276
        %s278 = smul.u32 32, %s23
        %s279 = smul.u32 32, %s23
        %v280 = vld [vmem:[%s240] sm:$0xff]
        %v281 = vld [vmem:[%s240 + $0x8] sm:$0xff]
        %v282 = vld [vmem:[%s240 + $0x10] sm:$0xff]
        %v283 = vld [vmem:[%s240 + $0x18] sm:$0xff]
        %v284 = vld [vmem:[%s240 + $0x20] sm:$0xff]
        %v285 = vld [vmem:[%s240 + $0x28] sm:$0xff]
        %v286 = vld [vmem:[%s240 + $0x30] sm:$0xff]
        %v287 = vld [vmem:[%s240 + $0x38] sm:$0xff]
        %v288 = vld [vmem:[%s240 + $0x40] sm:$0xff]
        %v289 = vld [vmem:[%s240 + $0x48] sm:$0xff]
        %v290 = vld [vmem:[%s240 + $0x50] sm:$0xff]
        %v291 = vld [vmem:[%s240 + $0x58] sm:$0xff]
        %v292 = vld [vmem:[%s240 + $0x60] sm:$0xff]
        %v293 = vld [vmem:[%s240 + $0x68] sm:$0xff]
        %v294 = vld [vmem:[%s240 + $0x70] sm:$0xff]
        %v295 = vld [vmem:[%s240 + $0x78] sm:$0xff]
        %v296 = vld [vmem:[%s240 + $0x80] sm:$0xff]
        %v297 = vld [vmem:[%s240 + $0x88] sm:$0xff]
        %v298 = vld [vmem:[%s240 + $0x90] sm:$0xff]
        %v299 = vld [vmem:[%s240 + $0x98] sm:$0xff]
        %v300 = vld [vmem:[%s240 + $0xa0] sm:$0xff]
        %v301 = vld [vmem:[%s240 + $0xa8] sm:$0xff]
        %v302 = vld [vmem:[%s240 + $0xb0] sm:$0xff]
        %v303 = vld [vmem:[%s240 + $0xb8] sm:$0xff]
        %v304 = vld [vmem:[%s240 + $0xc0] sm:$0xff]
        %v305 = vld [vmem:[%s240 + $0xc8] sm:$0xff]
        %v306 = vld [vmem:[%s240 + $0xd0] sm:$0xff]
        %v307 = vld [vmem:[%s240 + $0xd8] sm:$0xff]
        %v308 = vld [vmem:[%s240 + $0xe0] sm:$0xff]
        %v309 = vld [vmem:[%s240 + $0xe8] sm:$0xff]
        %v310 = vld [vmem:[%s240 + $0xf0] sm:$0xff]
        %v311 = vld [vmem:[%s240 + $0xf8] sm:$0xff]
        %v312 = vld [vmem:[#allocation5] sm:$0xff]
        %v313 = vld [vmem:[#allocation5 + $0x8] sm:$0xff]
        %v314 = vld [vmem:[#allocation5 + $0x10] sm:$0xff]
        %v315 = vld [vmem:[#allocation5 + $0x18] sm:$0xff]
        %v316 = vld [vmem:[#allocation5 + $0x20] sm:$0xff]
        %v317 = vld [vmem:[#allocation5 + $0x28] sm:$0xff]
        %v318 = vld [vmem:[#allocation5 + $0x30] sm:$0xff]
        %v319 = vld [vmem:[#allocation5 + $0x38] sm:$0xff]
        %v320 = vld [vmem:[#allocation5 + $0x40] sm:$0xff]
        %v321 = vld [vmem:[#allocation5 + $0x48] sm:$0xff]
        %v322 = vld [vmem:[#allocation5 + $0x50] sm:$0xff]
        %v323 = vld [vmem:[#allocation5 + $0x58] sm:$0xff]
        %v324 = vld [vmem:[#allocation5 + $0x60] sm:$0xff]
        %v325 = vld [vmem:[#allocation5 + $0x68] sm:$0xff]
        %v326 = vld [vmem:[#allocation5 + $0x70] sm:$0xff]
        %v327 = vld [vmem:[#allocation5 + $0x78] sm:$0xff]
        %v328 = vld [vmem:[%s2] sm:$0x1]
        %v330 = vperm.slane %v328, 0
        %332 = vmatpush.msra.mxu0 %v327
        %333 = vmatpush.msra.mxu0 %v326
        %334 = vmatpush.msra.mxu0 %v325
        %335 = vmatpush.msra.mxu0 %v324
        %336 = vmatpush.msra.mxu0 %v323
        %337 = vmatpush.msra.mxu0 %v322
        %338 = vmatpush.msra.mxu0 %v321
        %339 = vmatpush.msra.mxu0 %v320
        %340 = vmatpush.msra.mxu0 %v319
        %341 = vmatpush.msra.mxu0 %v318
        %342 = vmatpush.msra.mxu0 %v317
        %343 = vmatpush.msra.mxu0 %v316
        %344 = vmatpush.msra.mxu0 %v315
        %345 = vmatpush.msra.mxu0 %v314
        %346 = vmatpush.msra.mxu0 %v313
        %347 = vmatpush.msra.mxu0 %v312
        %348 = vmatmul.f32.gmra.mxu0 %v280
        %v349 = vpop.f32.mrf.mxu0
        %v350 = vadd.f32 %v330, %v349
        %351 = vmatmul.f32.gmra.mxu0 %v281
        %v352 = vpop.f32.mrf.mxu0
        %v353 = vadd.f32 %v330, %v352
        %354 = vmatmul.f32.gmra.mxu0 %v282
        %v355 = vpop.f32.mrf.mxu0
        %v356 = vadd.f32 %v330, %v355
        %357 = vmatmul.f32.gmra.mxu0 %v283
        %v358 = vpop.f32.mrf.mxu0
        %v359 = vadd.f32 %v330, %v358
        %360 = vmatmul.f32.gmra.mxu0 %v284
        %v361 = vpop.f32.mrf.mxu0
        %v362 = vadd.f32 %v330, %v361
        %363 = vmatmul.f32.gmra.mxu0 %v285
        %v364 = vpop.f32.mrf.mxu0
        %v365 = vadd.f32 %v330, %v364
        %366 = vmatmul.f32.gmra.mxu0 %v286
        %v367 = vpop.f32.mrf.mxu0
        %v368 = vadd.f32 %v330, %v367
        %369 = vmatmul.f32.gmra.mxu0 %v287
        %v370 = vpop.f32.mrf.mxu0
        %v371 = vadd.f32 %v330, %v370
        %372 = vmatmul.f32.gmra.mxu0 %v288
        %v373 = vpop.f32.mrf.mxu0
        %v374 = vadd.f32 %v330, %v373
        %375 = vmatmul.f32.gmra.mxu0 %v289
        %v376 = vpop.f32.mrf.mxu0
        %v377 = vadd.f32 %v330, %v376
        %378 = vmatmul.f32.gmra.mxu0 %v290
        %v379 = vpop.f32.mrf.mxu0
        %v380 = vadd.f32 %v330, %v379
        %381 = vmatmul.f32.gmra.mxu0 %v291
        %v382 = vpop.f32.mrf.mxu0
        %v383 = vadd.f32 %v330, %v382
        %384 = vmatmul.f32.gmra.mxu0 %v292
        %v385 = vpop.f32.mrf.mxu0
        %v386 = vadd.f32 %v330, %v385
        %387 = vmatmul.f32.gmra.mxu0 %v293
        %v388 = vpop.f32.mrf.mxu0
        %v389 = vadd.f32 %v330, %v388
        %390 = vmatmul.f32.gmra.mxu0 %v294
        %v391 = vpop.f32.mrf.mxu0
        %v392 = vadd.f32 %v330, %v391
        %393 = vmatmul.f32.gmra.mxu0 %v295
        %v394 = vpop.f32.mrf.mxu0
        %v395 = vadd.f32 %v330, %v394
        %396 = vmatmul.f32.gmra.mxu0 %v296
        %v397 = vpop.f32.mrf.mxu0
        %v398 = vadd.f32 %v330, %v397
        %399 = vmatmul.f32.gmra.mxu0 %v297
        %v400 = vpop.f32.mrf.mxu0
        %v401 = vadd.f32 %v330, %v400
        %402 = vmatmul.f32.gmra.mxu0 %v298
        %v403 = vpop.f32.mrf.mxu0
        %v404 = vadd.f32 %v330, %v403
        %405 = vmatmul.f32.gmra.mxu0 %v299
        %v406 = vpop.f32.mrf.mxu0
        %v407 = vadd.f32 %v330, %v406
        %408 = vmatmul.f32.gmra.mxu0 %v300
        %v409 = vpop.f32.mrf.mxu0
        %v410 = vadd.f32 %v330, %v409
        %411 = vmatmul.f32.gmra.mxu0 %v301
        %v412 = vpop.f32.mrf.mxu0
        %v413 = vadd.f32 %v330, %v412
        %414 = vmatmul.f32.gmra.mxu0 %v302
        %v415 = vpop.f32.mrf.mxu0
        %v416 = vadd.f32 %v330, %v415
        %417 = vmatmul.f32.gmra.mxu0 %v303
        %v418 = vpop.f32.mrf.mxu0
        %v419 = vadd.f32 %v330, %v418
        %420 = vmatmul.f32.gmra.mxu0 %v304
        %v421 = vpop.f32.mrf.mxu0
        %v422 = vadd.f32 %v330, %v421
        %423 = vmatmul.f32.gmra.mxu0 %v305
        %v424 = vpop.f32.mrf.mxu0
        %v425 = vadd.f32 %v330, %v424
        %426 = vmatmul.f32.gmra.mxu0 %v306
        %v427 = vpop.f32.mrf.mxu0
        %v428 = vadd.f32 %v330, %v427
        %429 = vmatmul.f32.gmra.mxu0 %v307
        %v430 = vpop.f32.mrf.mxu0
        %v431 = vadd.f32 %v330, %v430
        %432 = vmatmul.f32.gmra.mxu0 %v308
        %v433 = vpop.f32.mrf.mxu0
        %v434 = vadd.f32 %v330, %v433
        %435 = vmatmul.f32.gmra.mxu0 %v309
        %v436 = vpop.f32.mrf.mxu0
        %v437 = vadd.f32 %v330, %v436
        %438 = vmatmul.f32.gmra.mxu0 %v310
        %v439 = vpop.f32.mrf.mxu0
        %v440 = vadd.f32 %v330, %v439
        %441 = vmatmul.f32.gmra.mxu0 %v311
        %v442 = vpop.f32.mrf.mxu0
        %v443 = vadd.f32 %v330, %v442
        %444 = vdwg.mxu0
        %v445 = vmax.f32 %v350, 0.0
        %v446 = vmax.f32 %v353, 0.0
        %v447 = vmax.f32 %v356, 0.0
        %v448 = vmax.f32 %v359, 0.0
        %v449 = vmax.f32 %v362, 0.0
        %v450 = vmax.f32 %v365, 0.0
        %v451 = vmax.f32 %v368, 0.0
        %v452 = vmax.f32 %v371, 0.0
        %v453 = vmax.f32 %v374, 0.0
        %v454 = vmax.f32 %v377, 0.0
        %v455 = vmax.f32 %v380, 0.0
        %v456 = vmax.f32 %v383, 0.0
        %v457 = vmax.f32 %v386, 0.0
        %v458 = vmax.f32 %v389, 0.0
        %v459 = vmax.f32 %v392, 0.0
        %v460 = vmax.f32 %v395, 0.0
        %v461 = vmax.f32 %v398, 0.0
        %v462 = vmax.f32 %v401, 0.0
        %v463 = vmax.f32 %v404, 0.0
        %v464 = vmax.f32 %v407, 0.0
        %v465 = vmax.f32 %v410, 0.0
        %v466 = vmax.f32 %v413, 0.0
        %v467 = vmax.f32 %v416, 0.0
        %v468 = vmax.f32 %v419, 0.0
        %v469 = vmax.f32 %v422, 0.0
        %v470 = vmax.f32 %v425, 0.0
        %v471 = vmax.f32 %v428, 0.0
        %v472 = vmax.f32 %v431, 0.0
        %v473 = vmax.f32 %v434, 0.0
        %v474 = vmax.f32 %v437, 0.0
        %v475 = vmax.f32 %v440, 0.0
        %v476 = vmax.f32 %v443, 0.0
        %v477 = vld [vmem:[#allocation7] sm:$0xff]
        %v478 = vld [vmem:[#allocation7 + $0x8] sm:$0xff]
        %v479 = vld [vmem:[#allocation7 + $0x10] sm:$0xff]
        %v480 = vld [vmem:[#allocation7 + $0x18] sm:$0xff]
        %v481 = vld [vmem:[#allocation7 + $0x20] sm:$0xff]
        %v482 = vld [vmem:[#allocation7 + $0x28] sm:$0xff]
        %v483 = vld [vmem:[#allocation7 + $0x30] sm:$0xff]
        %v484 = vld [vmem:[#allocation7 + $0x38] sm:$0xff]
        %v485 = vld [vmem:[#allocation7 + $0x40] sm:$0xff]
        %v486 = vld [vmem:[#allocation7 + $0x48] sm:$0xff]
        %v487 = vld [vmem:[#allocation7 + $0x50] sm:$0xff]
        %v488 = vld [vmem:[#allocation7 + $0x58] sm:$0xff]
        %v489 = vld [vmem:[#allocation7 + $0x60] sm:$0xff]
        %v490 = vld [vmem:[#allocation7 + $0x68] sm:$0xff]
        %v491 = vld [vmem:[#allocation7 + $0x70] sm:$0xff]
        %v492 = vld [vmem:[#allocation7 + $0x78] sm:$0xff]
        %v493 = vld [vmem:[%s4] sm:$0x1]
        %v495 = vperm.slane %v493, 0
        %497 = vmatpush.msra.mxu0 %v492
        %498 = vmatpush.msra.mxu0 %v491
        %499 = vmatpush.msra.mxu0 %v490
        %500 = vmatpush.msra.mxu0 %v489
        %501 = vmatpush.msra.mxu0 %v488
        %502 = vmatpush.msra.mxu0 %v487
        %503 = vmatpush.msra.mxu0 %v486
        %504 = vmatpush.msra.mxu0 %v485
        %505 = vmatpush.msra.mxu0 %v484
        %506 = vmatpush.msra.mxu0 %v483
        %507 = vmatpush.msra.mxu0 %v482
        %508 = vmatpush.msra.mxu0 %v481
        %509 = vmatpush.msra.mxu0 %v480
        %510 = vmatpush.msra.mxu0 %v479
        %511 = vmatpush.msra.mxu0 %v478
        %512 = vmatpush.msra.mxu0 %v477
        %513 = vmatmul.f32.gmra.mxu0 %v445
        %v514 = vpop.f32.mrf.mxu0
        %v515 = vadd.f32 %v495, %v514
        %516 = vmatmul.f32.gmra.mxu0 %v446
        %v517 = vpop.f32.mrf.mxu0
        %v518 = vadd.f32 %v495, %v517
        %519 = vmatmul.f32.gmra.mxu0 %v447
        %v520 = vpop.f32.mrf.mxu0
        %v521 = vadd.f32 %v495, %v520
        %522 = vmatmul.f32.gmra.mxu0 %v448
        %v523 = vpop.f32.mrf.mxu0
        %v524 = vadd.f32 %v495, %v523
        %525 = vmatmul.f32.gmra.mxu0 %v449
        %v526 = vpop.f32.mrf.mxu0
        %v527 = vadd.f32 %v495, %v526
        %528 = vmatmul.f32.gmra.mxu0 %v450
        %v529 = vpop.f32.mrf.mxu0
        %v530 = vadd.f32 %v495, %v529
        %531 = vmatmul.f32.gmra.mxu0 %v451
        %v532 = vpop.f32.mrf.mxu0
        %v533 = vadd.f32 %v495, %v532
        %534 = vmatmul.f32.gmra.mxu0 %v452
        %v535 = vpop.f32.mrf.mxu0
        %v536 = vadd.f32 %v495, %v535
        %537 = vmatmul.f32.gmra.mxu0 %v453
        %v538 = vpop.f32.mrf.mxu0
        %v539 = vadd.f32 %v495, %v538
        %540 = vmatmul.f32.gmra.mxu0 %v454
        %v541 = vpop.f32.mrf.mxu0
        %v542 = vadd.f32 %v495, %v541
        %543 = vmatmul.f32.gmra.mxu0 %v455
        %v544 = vpop.f32.mrf.mxu0
        %v545 = vadd.f32 %v495, %v544
        %546 = vmatmul.f32.gmra.mxu0 %v456
        %v547 = vpop.f32.mrf.mxu0
        %v548 = vadd.f32 %v495, %v547
        %549 = vmatmul.f32.gmra.mxu0 %v457
        %v550 = vpop.f32.mrf.mxu0
        %v551 = vadd.f32 %v495, %v550
        %552 = vmatmul.f32.gmra.mxu0 %v458
        %v553 = vpop.f32.mrf.mxu0
        %v554 = vadd.f32 %v495, %v553
        %555 = vmatmul.f32.gmra.mxu0 %v459
        %v556 = vpop.f32.mrf.mxu0
        %v557 = vadd.f32 %v495, %v556
        %558 = vmatmul.f32.gmra.mxu0 %v460
        %v559 = vpop.f32.mrf.mxu0
        %v560 = vadd.f32 %v495, %v559
        %561 = vmatmul.f32.gmra.mxu0 %v461
        %v562 = vpop.f32.mrf.mxu0
        %v563 = vadd.f32 %v495, %v562
        %564 = vmatmul.f32.gmra.mxu0 %v462
        %v565 = vpop.f32.mrf.mxu0
        %v566 = vadd.f32 %v495, %v565
        %567 = vmatmul.f32.gmra.mxu0 %v463
        %v568 = vpop.f32.mrf.mxu0
        %v569 = vadd.f32 %v495, %v568
        %570 = vmatmul.f32.gmra.mxu0 %v464
        %v571 = vpop.f32.mrf.mxu0
        %v572 = vadd.f32 %v495, %v571
        %573 = vmatmul.f32.gmra.mxu0 %v465
        %v574 = vpop.f32.mrf.mxu0
        %v575 = vadd.f32 %v495, %v574
        %576 = vmatmul.f32.gmra.mxu0 %v466
        %v577 = vpop.f32.mrf.mxu0
        %v578 = vadd.f32 %v495, %v577
        %579 = vmatmul.f32.gmra.mxu0 %v467
        %v580 = vpop.f32.mrf.mxu0
        %v581 = vadd.f32 %v495, %v580
        %582 = vmatmul.f32.gmra.mxu0 %v468
        %v583 = vpop.f32.mrf.mxu0
        %v584 = vadd.f32 %v495, %v583
        %585 = vmatmul.f32.gmra.mxu0 %v469
        %v586 = vpop.f32.mrf.mxu0
        %v587 = vadd.f32 %v495, %v586
        %588 = vmatmul.f32.gmra.mxu0 %v470
        %v589 = vpop.f32.mrf.mxu0
        %v590 = vadd.f32 %v495, %v589
        %591 = vmatmul.f32.gmra.mxu0 %v471
        %v592 = vpop.f32.mrf.mxu0
        %v593 = vadd.f32 %v495, %v592
        %594 = vmatmul.f32.gmra.mxu0 %v472
        %v595 = vpop.f32.mrf.mxu0
        %v596 = vadd.f32 %v495, %v595
        %597 = vmatmul.f32.gmra.mxu0 %v473
        %v598 = vpop.f32.mrf.mxu0
        %v599 = vadd.f32 %v495, %v598
        %600 = vmatmul.f32.gmra.mxu0 %v474
        %v601 = vpop.f32.mrf.mxu0
        %v602 = vadd.f32 %v495, %v601
        %603 = vmatmul.f32.gmra.mxu0 %v475
        %v604 = vpop.f32.mrf.mxu0
        %v605 = vadd.f32 %v495, %v604
        %606 = vmatmul.f32.gmra.mxu0 %v476
        %v607 = vpop.f32.mrf.mxu0
        %v608 = vadd.f32 %v495, %v607
        %609 = vdwg.mxu0
        %v610 = vmax.f32 %v515, 0.0
        %v611 = vmax.f32 %v518, 0.0
        %v612 = vmax.f32 %v521, 0.0
        %v613 = vmax.f32 %v524, 0.0
        %v614 = vmax.f32 %v527, 0.0
        %v615 = vmax.f32 %v530, 0.0
        %v616 = vmax.f32 %v533, 0.0
        %v617 = vmax.f32 %v536, 0.0
        %v618 = vmax.f32 %v539, 0.0
        %v619 = vmax.f32 %v542, 0.0
        %v620 = vmax.f32 %v545, 0.0
        %v621 = vmax.f32 %v548, 0.0
        %v622 = vmax.f32 %v551, 0.0
        %v623 = vmax.f32 %v554, 0.0
        %v624 = vmax.f32 %v557, 0.0
        %v625 = vmax.f32 %v560, 0.0
        %v626 = vmax.f32 %v563, 0.0
        %v627 = vmax.f32 %v566, 0.0
        %v628 = vmax.f32 %v569, 0.0
        %v629 = vmax.f32 %v572, 0.0
        %v630 = vmax.f32 %v575, 0.0
        %v631 = vmax.f32 %v578, 0.0
        %v632 = vmax.f32 %v581, 0.0
        %v633 = vmax.f32 %v584, 0.0
        %v634 = vmax.f32 %v587, 0.0
        %v635 = vmax.f32 %v590, 0.0
        %v636 = vmax.f32 %v593, 0.0
        %v637 = vmax.f32 %v596, 0.0
        %v638 = vmax.f32 %v599, 0.0
        %v639 = vmax.f32 %v602, 0.0
        %v640 = vmax.f32 %v605, 0.0
        %v641 = vmax.f32 %v608, 0.0
        %642 = vst [vmem:[%s277] sm:$0xff] %v610
        %643 = vst [vmem:[%s277 + $0x8] sm:$0xff] %v611
        %644 = vst [vmem:[%s277 + $0x10] sm:$0xff] %v612
        %645 = vst [vmem:[%s277 + $0x18] sm:$0xff] %v613
        %646 = vst [vmem:[%s277 + $0x20] sm:$0xff] %v614
        %647 = vst [vmem:[%s277 + $0x28] sm:$0xff] %v615
        %648 = vst [vmem:[%s277 + $0x30] sm:$0xff] %v616
        %649 = vst [vmem:[%s277 + $0x38] sm:$0xff] %v617
        %650 = vst [vmem:[%s277 + $0x40] sm:$0xff] %v618
        %651 = vst [vmem:[%s277 + $0x48] sm:$0xff] %v619
        %652 = vst [vmem:[%s277 + $0x50] sm:$0xff] %v620
        %653 = vst [vmem:[%s277 + $0x58] sm:$0xff] %v621
        %654 = vst [vmem:[%s277 + $0x60] sm:$0xff] %v622
        %655 = vst [vmem:[%s277 + $0x68] sm:$0xff] %v623
        %656 = vst [vmem:[%s277 + $0x70] sm:$0xff] %v624
        %657 = vst [vmem:[%s277 + $0x78] sm:$0xff] %v625
        %658 = vst [vmem:[%s277 + $0x80] sm:$0xff] %v626
        %659 = vst [vmem:[%s277 + $0x88] sm:$0xff] %v627
        %660 = vst [vmem:[%s277 + $0x90] sm:$0xff] %v628
        %661 = vst [vmem:[%s277 + $0x98] sm:$0xff] %v629
        %662 = vst [vmem:[%s277 + $0xa0] sm:$0xff] %v630
        %663 = vst [vmem:[%s277 + $0xa8] sm:$0xff] %v631
        %664 = vst [vmem:[%s277 + $0xb0] sm:$0xff] %v632
        %665 = vst [vmem:[%s277 + $0xb8] sm:$0xff] %v633
        %666 = vst [vmem:[%s277 + $0xc0] sm:$0xff] %v634
        %667 = vst [vmem:[%s277 + $0xc8] sm:$0xff] %v635
        %668 = vst [vmem:[%s277 + $0xd0] sm:$0xff] %v636
        %669 = vst [vmem:[%s277 + $0xd8] sm:$0xff] %v637
        %670 = vst [vmem:[%s277 + $0xe0] sm:$0xff] %v638
        %671 = vst [vmem:[%s277 + $0xe8] sm:$0xff] %v639
        %672 = vst [vmem:[%s277 + $0xf0] sm:$0xff] %v640
        %673 = vst [vmem:[%s277 + $0xf8] sm:$0xff] %v641
        %s674 = sand.u32 %s141, 1
        %s675 = scalar_lea.sflag [#allocation4], %s674
        %s676 = sand.u32 %s141, 1
        %s677 = smul.addr %s676, 256
        %s678 = scalar_lea.vmem [#allocation8], %s677
        // Predicated region
        $region53: #{tpu_custom_call.1} parent=39 // pred_check
          %p679 = pneg %p151
        $region54: #{tpu_custom_call.1} parent=39 // pred_check_branch
          %681 = sbr.rel (%p679) target = $region56
        $region55: #{tpu_custom_call.1} parent=39 // pred_region
          %s682 = smul.u32 32, %s23
          %684 = vsyncadd %s675, 0
          %s685 = smul.addr %s682, 8
          %s686 = scalar_lea.hbm %s5, %s685
          %s687 = sshll.u32 %s678, 4
          %s688 = int_to_ptr.vmem [resolvable:$true] %s687
          %s689 = sshll.u32 %s686, 4
          %s690 = int_to_ptr.hbm [resolvable:$true] %s689
          %695 = dma.vmem_to_hbm [thread:$0]  %s688, 4096, %s690, %s675, 128, 128, 8
        $region56: #{tpu_custom_call.1} parent=39 // pred_fallthru
          _
      $region40: #{tpu_custom_call.1} parent=5 // pred_fallthru
        _
      %p696 = scmp.le.s32.totalorder 2, %s18
      // Predicated region
      $region57: #{tpu_custom_call.1} parent=5 // pred_check
        %p697 = pneg %p696
      $region58: #{tpu_custom_call.1} parent=5 // pred_check_branch
        %699 = sbr.rel (%p697) target = $region60
      $region59: #{tpu_custom_call.1} parent=5 // pred_region
        %s700 = ssub.s32 %s18, 2
        // Predicated region
        $region61: #{tpu_custom_call.1} parent=59 // pred_check
          %p701 = pneg %p157
        $region62: #{tpu_custom_call.1} parent=59 // pred_check_branch
          %703 = sbr.rel (%p701) target = $region64
        $region63: #{tpu_custom_call.1} parent=59 // pred_region
          %s704 = sand.u32 %s142, 1
          %s705 = scalar_lea.sflag [#allocation4], %s704
          %s706 = sand.u32 %s142, 1
          %s707 = smul.addr %s706, 256
          %s708 = scalar_lea.vmem [#allocation8], %s707
          %710 = dma.done %s705, 4096
        $region64: #{tpu_custom_call.1} parent=59 // pred_fallthru
          _
      $region60: #{tpu_custom_call.1} parent=5 // pred_fallthru
        _
    $region6: #{tpu_custom_call.1} parent=1 // loop_footer
      %s22 = sadd.s32 1, %s18
    $region7: #{tpu_custom_call.1} parent=1 // loop_footer_branch
      %17 = sbr.rel target = $region3
    $region8: #{tpu_custom_call.1} parent=1 // loop_exit
      _
    %711 = vsyncpa [#allocation3], 1
    %s712 = scalar_lea.sflag [#allocation3], 1
    %713 = vsyncpa %s712, 1
    %714 = vsyncpa [#allocation6], 1
    %715 = vsyncpa [#allocation4], 1
    %s716 = scalar_lea.sflag [#allocation4], 1
    %717 = vsyncpa %s716, 1

</llo_original>
